<compile_context>
chip_gen: v6e
topology: v6e:2x2x1
jax: 0.10.0
libtpu: 0.0.40
codegen_flags: <defaults>
</compile_context>

<pallas_src>
import functools

import jax
import jax.numpy as jnp
from jax.experimental import pallas as pl
from jax.experimental.pallas import tpu as pltpu

N_EMBD = 64
HIDDEN = 4 * N_EMBD
DROPOUT_P = 0.2


def _round_up(a: int, b: int) -> int:
    return -(-a // b) * b


def _ffn_kernel(seed_ref, x_ref, w1_ref, b1_ref, w2_ref, b2_ref, o_ref,
                *, training: bool, dropout_p: float, block_rows: int):
    # x_ref: (tm, C) f32, w1_ref: (C, H) bf16, b1_ref: (1, H) f32,
    # w2_ref: (H, C) bf16, b2_ref: (1, C) f32, o_ref: (tm, C)
    x = x_ref[...].astype(jnp.bfloat16)

    # Linear 1 + ReLU  (bf16 MXU matmul, f32 accumulation)
    h = jnp.dot(x, w1_ref[...], preferred_element_type=jnp.float32) + b1_ref[...]
    h = jnp.maximum(h, 0.0)

    # Linear 2
    y = jnp.dot(h.astype(jnp.bfloat16), w2_ref[...],
                preferred_element_type=jnp.float32) + b2_ref[...]

    if training and dropout_p > 0.0:
        # Inverted dropout with a stateless counter-based hash PRNG
        # (splitmix32/murmur-style finalizer). Mask depends only on
        # (seed, global row, col) -> reproducible across tile sizes and
        # lowers on both the Mosaic TPU backend and interpret mode.
        # TODO(synk): RNG stream differs from torch.nn.Dropout.
        tm, cc = y.shape
        row = jax.lax.broadcasted_iota(jnp.int32, (tm, cc), 0)
        col = jax.lax.broadcasted_iota(jnp.int32, (tm, cc), 1)
        grow = row + pl.program_id(0) * block_rows          # global row index
        idx = (grow * cc + col).astype(jnp.uint32)
        seed_u = seed_ref[0].astype(jnp.uint32)
        z = idx + seed_u * jnp.uint32(0x9E3779B9)
        z = (z ^ (z >> 16)) * jnp.uint32(0x85EBCA6B)
        z = (z ^ (z >> 13)) * jnp.uint32(0xC2B2AE35)
        z = z ^ (z >> 16)
        # Keep-test directly on the raw bits: drop iff z < p * 2^32.
        threshold = jnp.uint32(min(int(dropout_p * (1 << 32)), (1 << 32) - 1))
        keep = z >= threshold
        y = jnp.where(keep, y * (1.0 / (1.0 - dropout_p)), 0.0)

    o_ref[...] = y.astype(o_ref.dtype)


def feed_forward(x, w1, b1, w2, b2, seed, *, training=True,
                 dropout_p=DROPOUT_P, tm=256):
    """x: (B, T, n_embd). w1: (n_embd, 4n), b1: (4n,), w2: (4n, n_embd), b2: (n_embd,).

    tm: row tile. 256 is a good default on v5e/v6e/v7x (weights are only
    ~128 KiB so VMEM is nowhere near a constraint); the tail is handled by
    padding M up to a multiple of the effective tile.
    """
    B, T, C = x.shape
    H = w1.shape[1]
    M = B * T

    # Effective tile: multiple of 8, never larger than the (padded) problem.
    tm_eff = _round_up(min(tm, _round_up(M, 8)), 8)
    Mp = _round_up(M, tm_eff)

    x2 = x.reshape(M, C)
    if Mp != M:
        x2 = jnp.pad(x2, ((0, Mp - M), (0, 0)))

    w1b = w1.astype(jnp.bfloat16)
    w2b = w2.astype(jnp.bfloat16)
    b1r = b1.reshape(1, H).astype(jnp.float32)
    b2r = b2.reshape(1, C).astype(jnp.float32)
    seed_arr = jnp.asarray([seed], dtype=jnp.int32)

    kernel = functools.partial(_ffn_kernel, training=training,
                               dropout_p=dropout_p, block_rows=tm_eff)

    itemsize = jnp.dtype(x.dtype).itemsize
    cost = pl.CostEstimate(
        flops=2 * Mp * (C * H + H * C),
        transcendentals=0,
        bytes_accessed=Mp * C * itemsize            # x in
        + Mp * C * itemsize                         # out
        + (C * H + H * C) * 2                       # bf16 weights
        + (H + C) * 4,                              # biases
    )

    out = pl.pallas_call(
        kernel,
        out_shape=jax.ShapeDtypeStruct((Mp, C), x.dtype),
        grid_spec=pltpu.PrefetchScalarGridSpec(
            num_scalar_prefetch=1,
            grid=(Mp // tm_eff,),
            in_specs=[
                pl.BlockSpec((tm_eff, C), lambda i, seed: (i, 0)),  # x tile
                pl.BlockSpec((C, H), lambda i, seed: (0, 0)),       # W1 (resident)
                pl.BlockSpec((1, H), lambda i, seed: (0, 0)),       # b1
                pl.BlockSpec((H, C), lambda i, seed: (0, 0)),       # W2 (resident)
                pl.BlockSpec((1, C), lambda i, seed: (0, 0)),       # b2
            ],
            out_specs=pl.BlockSpec((tm_eff, C), lambda i, seed: (i, 0)),
        ),
        compiler_params=pltpu.CompilerParams(
            dimension_semantics=("parallel",)),      # row tiles are independent
        cost_estimate=cost,
    )(seed_arr, x2, w1b, b1r, w2b, b2r)

    if Mp != M:
        out = out[:M]
    return out.reshape(B, T, C)


def init_params(key, n_embd=N_EMBD):
    """Deterministic init mimicking torch.nn.Linear (U(-1/sqrt(fan_in), +))."""
    k1, k2, k3, k4 = jax.random.split(key, 4)
    hid = 4 * n_embd
    bound1 = 1.0 / jnp.sqrt(n_embd)
    bound2 = 1.0 / jnp.sqrt(hid)
    w1 = jax.random.uniform(k1, (n_embd, hid), jnp.float32, -bound1, bound1)
    b1 = jax.random.uniform(k2, (hid,), jnp.float32, -bound1, bound1)
    w2 = jax.random.uniform(k3, (hid, n_embd), jnp.float32, -bound2, bound2)
    b2 = jax.random.uniform(k4, (n_embd,), jnp.float32, -bound2, bound2)
    return w1, b1, w2, b2


if __name__ == "__main__":
    key = jax.random.PRNGKey(0)
    kx, kp = jax.random.split(key)

    B, T = 2, 8  # batch=2, seq=8, n_embd=64 (from the module)
    x = jax.random.normal(kx, (B, T, N_EMBD), jnp.float32)
    w1, b1, w2, b2 = init_params(kp)

    y = feed_forward(x, w1, b1, w2, b2, seed=1234, training=True)
    y = jax.block_until_ready(y)
    assert y.shape == (B, T, N_EMBD) and y.dtype == x.dtype

    # Also exercise the eval path (dropout disabled) once.
    y_eval = feed_forward(x, w1, b1, w2, b2, seed=0, training=False)
    y_eval = jax.block_until_ready(y_eval)
    assert y_eval.shape == (B, T, N_EMBD)

    print("KERNEL_OK")
</pallas_src>

<mosaic_0001>
module attributes {stable_mosaic.version = 11 : i64} {
  func.func @_ffn_kernel(%arg0: i32, %arg1: memref<1xi32, #tpu.memory_space<smem>>, %arg2: memref<16x64xf32, #tpu.memory_space<vmem>>, %arg3: memref<64x256xbf16, #tpu.memory_space<vmem>>, %arg4: memref<1x256xf32, #tpu.memory_space<vmem>>, %arg5: memref<256x64xbf16, #tpu.memory_space<vmem>>, %arg6: memref<1x64xf32, #tpu.memory_space<vmem>>, %arg7: memref<16x64xf32, #tpu.memory_space<vmem>>) attributes {dimension_semantics = [#tpu.dimension_semantics<parallel>], iteration_bounds = array<i64: 1>, scalar_prefetch = 1 : i64, scratch_operands = 0 : i64, tpu.core_type = #tpu.core_type<tc>, window_params = [{transform_indices = @transform_0, window_bounds = array<i64: 16, 64>}, {pipeline_mode = #tpu.pipeline_mode<synchronous>, transform_indices = @transform_1, window_bounds = array<i64: 64, 256>}, {pipeline_mode = #tpu.pipeline_mode<synchronous>, transform_indices = @transform_2, window_bounds = array<i64: 1, 256>}, {pipeline_mode = #tpu.pipeline_mode<synchronous>, transform_indices = @transform_3, window_bounds = array<i64: 256, 64>}, {pipeline_mode = #tpu.pipeline_mode<synchronous>, transform_indices = @transform_4, window_bounds = array<i64: 1, 64>}, {transform_indices = @transform_5, window_bounds = array<i64: 16, 64>}]} {
    %c0 = arith.constant 0 : index
    %c0_0 = arith.constant 0 : index
    %0 = vector.load %arg2[%c0, %c0_0] : memref<16x64xf32, #tpu.memory_space<vmem>>, vector<16x64xf32>
    %1 = arith.truncf %0 : vector<16x64xf32> to vector<16x64xbf16>
    %c0_1 = arith.constant 0 : index
    %c0_2 = arith.constant 0 : index
    %2 = vector.load %arg3[%c0_1, %c0_2] : memref<64x256xbf16, #tpu.memory_space<vmem>>, vector<64x256xbf16>
    %cst = arith.constant dense<0.000000e+00> : vector<16x256xf32>
    %3 = tpu.matmul %1, %2, %cst {dimension_numbers = #tpu.dot_dimension_numbers<[1], [0], [0], [1], [0, 0, 1, 1], [], []>} : vector<16x64xbf16>, vector<64x256xbf16>, vector<16x256xf32> -> vector<16x256xf32>
    %c0_3 = arith.constant 0 : index
    %c0_4 = arith.constant 0 : index
    %4 = vector.load %arg4[%c0_3, %c0_4] : memref<1x256xf32, #tpu.memory_space<vmem>>, vector<1x256xf32>
    %5 = vector.broadcast %4 : vector<1x256xf32> to vector<16x256xf32>
    %6 = arith.addf %3, %5 : vector<16x256xf32>
    %cst_5 = arith.constant 0.000000e+00 : f32
    %7 = vector.broadcast %cst_5 : f32 to vector<16x256xf32>
    %8 = arith.maximumf %6, %7 : vector<16x256xf32>
    %9 = arith.truncf %8 : vector<16x256xf32> to vector<16x256xbf16>
    %c0_6 = arith.constant 0 : index
    %c0_7 = arith.constant 0 : index
    %10 = vector.load %arg5[%c0_6, %c0_7] : memref<256x64xbf16, #tpu.memory_space<vmem>>, vector<256x64xbf16>
    %cst_8 = arith.constant dense<0.000000e+00> : vector<16x64xf32>
    %11 = tpu.matmul %9, %10, %cst_8 {dimension_numbers = #tpu.dot_dimension_numbers<[1], [0], [0], [1], [0, 0, 1, 1], [], []>} : vector<16x256xbf16>, vector<256x64xbf16>, vector<16x64xf32> -> vector<16x64xf32>
    %c0_9 = arith.constant 0 : index
    %c0_10 = arith.constant 0 : index
    %12 = vector.load %arg6[%c0_9, %c0_10] : memref<1x64xf32, #tpu.memory_space<vmem>>, vector<1x64xf32>
    %13 = vector.broadcast %12 : vector<1x64xf32> to vector<16x64xf32>
    %14 = arith.addf %11, %13 : vector<16x64xf32>
    %15 = tpu.iota {dimensions = array<i32: 0>} : vector<16x64xi32>
    %16 = tpu.iota {dimensions = array<i32: 1>} : vector<16x64xi32>
    %c16_i32 = arith.constant 16 : i32
    %17 = arith.muli %arg0, %c16_i32 : i32
    %18 = vector.broadcast %17 : i32 to vector<16x64xi32>
    %19 = arith.addi %15, %18 : vector<16x64xi32>
    %c64_i32 = arith.constant 64 : i32
    %20 = vector.broadcast %c64_i32 : i32 to vector<16x64xi32>
    %21 = arith.muli %19, %20 : vector<16x64xi32>
    %22 = arith.addi %21, %16 : vector<16x64xi32>
    %c0_11 = arith.constant 0 : index
    %23 = memref.load %arg1[%c0_11] : memref<1xi32, #tpu.memory_space<smem>>
    %c-1640531527_i32 = arith.constant -1640531527 : i32
    %24 = arith.muli %23, %c-1640531527_i32 : i32
    %25 = vector.broadcast %24 : i32 to vector<16x64xi32>
    %26 = arith.addi %22, %25 : vector<16x64xi32>
    %c16_i32_12 = arith.constant 16 : i32
    %27 = vector.broadcast %c16_i32_12 : i32 to vector<16x64xi32>
    %28 = arith.shrui %26, %27 : vector<16x64xi32>
    %29 = arith.xori %26, %28 : vector<16x64xi32>
    %c-2048144789_i32 = arith.constant -2048144789 : i32
    %30 = vector.broadcast %c-2048144789_i32 : i32 to vector<16x64xi32>
    %31 = arith.muli %29, %30 : vector<16x64xi32>
    %c13_i32 = arith.constant 13 : i32
    %32 = vector.broadcast %c13_i32 : i32 to vector<16x64xi32>
    %33 = arith.shrui %31, %32 : vector<16x64xi32>
    %34 = arith.xori %31, %33 : vector<16x64xi32>
    %c-1028477387_i32 = arith.constant -1028477387 : i32
    %35 = vector.broadcast %c-1028477387_i32 : i32 to vector<16x64xi32>
    %36 = arith.muli %34, %35 : vector<16x64xi32>
    %c16_i32_13 = arith.constant 16 : i32
    %37 = vector.broadcast %c16_i32_13 : i32 to vector<16x64xi32>
    %38 = arith.shrui %36, %37 : vector<16x64xi32>
    %39 = arith.xori %36, %38 : vector<16x64xi32>
    %c858993459_i32 = arith.constant 858993459 : i32
    %40 = vector.broadcast %c858993459_i32 : i32 to vector<16x64xi32>
    %41 = arith.cmpi uge, %39, %40 : vector<16x64xi32>
    %cst_14 = arith.constant 1.250000e+00 : f32
    %42 = vector.broadcast %cst_14 : f32 to vector<16x64xf32>
    %43 = arith.mulf %14, %42 : vector<16x64xf32>
    %cst_15 = arith.constant 0.000000e+00 : f32
    %44 = vector.broadcast %cst_15 : f32 to vector<16x64xf32>
    %45 = arith.select %41, %43, %44 : vector<16x64xi1>, vector<16x64xf32>
    %c0_16 = arith.constant 0 : index
    %c0_17 = arith.constant 0 : index
    %46 = vector.load %arg7[%c0_16, %c0_17] : memref<16x64xf32, #tpu.memory_space<vmem>>, vector<16x64xf32>
    tpu.vector_store %arg7[%c0_16, %c0_17], %45 {strides = array<i32>} : memref<16x64xf32, #tpu.memory_space<vmem>>, vector<16x64xf32>,
    return
  }
  func.func @transform_0(%arg0: i32, %arg1: memref<1xi32, #tpu.memory_space<smem>>) -> (i32, i32) {
    %c0_i32 = arith.constant 0 : i32
    %c0_i32_0 = arith.constant 0 : i32
    return %arg0, %c0_i32 : i32, i32
  }
  func.func @transform_1(%arg0: i32, %arg1: memref<1xi32, #tpu.memory_space<smem>>) -> (i32, i32) {
    %c0_i32 = arith.constant 0 : i32
    %c0_i32_0 = arith.constant 0 : i32
    %c0_i32_1 = arith.constant 0 : i32
    return %c0_i32, %c0_i32_0 : i32, i32
  }
  func.func @transform_2(%arg0: i32, %arg1: memref<1xi32, #tpu.memory_space<smem>>) -> (i32, i32) {
    %c0_i32 = arith.constant 0 : i32
    %c0_i32_0 = arith.constant 0 : i32
    %c0_i32_1 = arith.constant 0 : i32
    return %c0_i32, %c0_i32_0 : i32, i32
  }
  func.func @transform_3(%arg0: i32, %arg1: memref<1xi32, #tpu.memory_space<smem>>) -> (i32, i32) {
    %c0_i32 = arith.constant 0 : i32
    %c0_i32_0 = arith.constant 0 : i32
    %c0_i32_1 = arith.constant 0 : i32
    return %c0_i32, %c0_i32_0 : i32, i32
  }
  func.func @transform_4(%arg0: i32, %arg1: memref<1xi32, #tpu.memory_space<smem>>) -> (i32, i32) {
    %c0_i32 = arith.constant 0 : i32
    %c0_i32_0 = arith.constant 0 : i32
    %c0_i32_1 = arith.constant 0 : i32
    return %c0_i32, %c0_i32_0 : i32, i32
  }
  func.func @transform_5(%arg0: i32, %arg1: memref<1xi32, #tpu.memory_space<smem>>) -> (i32, i32) {
    %c0_i32 = arith.constant 0 : i32
    %c0_i32_0 = arith.constant 0 : i32
    return %arg0, %c0_i32 : i32, i32
  }
}

</mosaic_0001>

<llo_original>
// kernel: tpu_custom_call.1
$region0: #{tpu_custom_call.1}
  #allocation0 [shape = 'u32[]', space=smem, size = 0x4, offset = 0x4, fixed_abs, tag = 'smem constant byte address 0x4 - core index']
  #allocation1 [shape = 'u32[144,128]{1,0:T(1,128)}', space=vmem, size = 0x12000, scoped, tag = 'internal scratch']
  #allocation2 [shape = 's32[1]{0}', space=sflag, size = 0x4, scoped, tag = 'scoped memory for tpu_custom_call.1']
  #allocation3 [shape = 's32[1]{0:T(128)S(6)}', space=smem, size = 0x200, scoped, tag = 'prefetched SMEM operand 0']
  %s0 = inlined_call_operand.<no memory space> [shape: s32[1], index: 0, kind: input, shape index: {}]
  %s1 = inlined_call_operand.vmem [shape: f32[16,64], index: 1, kind: input, shape index: {}]
  %s2 = inlined_call_operand.vmem [shape: bf16[64,256], index: 2, kind: input, shape index: {}]
  %s3 = inlined_call_operand.vmem [shape: f32[1,256], index: 3, kind: input, shape index: {}]
  %s4 = inlined_call_operand.vmem [shape: bf16[256,64], index: 4, kind: input, shape index: {}]
  %s5 = inlined_call_operand.vmem [shape: f32[1,64], index: 5, kind: input, shape index: {}]
  %s6 = inlined_call_operand.hbm [shape: f32[16,64], index: 6, kind: output, shape index: {}]
  %s7 = sld [smem:[#allocation0]]
  $region30: #{tpu_custom_call.1} parent=0
    _
  %s9 = ssub.s32 1, %s7
  %s10 = scalar_select 0, %s9, %s7
  %11 = sst [smem:[#allocation3]] %s0
  $region1: #{tpu_custom_call.1} parent=0
    #allocation4 [shape = 'u8[8192]{0}', space=vmem, size = 0x2000, scoped, tag = 'output window, operand 0, single buffered']
    #allocation5 [shape = 's32[1]{0}', space=sflag, size = 0x4, scoped, tag = 'scoped memory for tpu_custom_call.1']
    %12 = vsyncpa [#allocation5], 0
    // Predicated region
    $region2: #{tpu_custom_call.1} parent=1 // pred_check
      _
    $region3: #{tpu_custom_call.1} parent=1 // pred_check_branch
      %14 = sbr.rel (0) target = $region5
    $region4: #{tpu_custom_call.1} parent=1 // pred_region
      _
    $region5: #{tpu_custom_call.1} parent=1 // pred_fallthru
      _
    // Predicated region
    $region6: #{tpu_custom_call.1} parent=1 // pred_check
      _
    $region7: #{tpu_custom_call.1} parent=1 // pred_check_branch
      %16 = sbr.rel (0) target = $region9
    $region8: #{tpu_custom_call.1} parent=1 // pred_region
      _
    $region9: #{tpu_custom_call.1} parent=1 // pred_fallthru
      _
    // Predicated region
    $region10: #{tpu_custom_call.1} parent=1 // pred_check
      _
    $region11: #{tpu_custom_call.1} parent=1 // pred_check_branch
      %18 = sbr.rel (0) target = $region13
    $region12: #{tpu_custom_call.1} parent=1 // pred_region
      _
    $region13: #{tpu_custom_call.1} parent=1 // pred_fallthru
      _
    // Predicated region
    $region14: #{tpu_custom_call.1} parent=1 // pred_check
      _
    $region15: #{tpu_custom_call.1} parent=1 // pred_check_branch
      %20 = sbr.rel (0) target = $region17
    $region16: #{tpu_custom_call.1} parent=1 // pred_region
      _
    $region17: #{tpu_custom_call.1} parent=1 // pred_fallthru
      _
    // Predicated region
    $region18: #{tpu_custom_call.1} parent=1 // pred_check
      _
    $region19: #{tpu_custom_call.1} parent=1 // pred_check_branch
      %22 = sbr.rel (0) target = $region21
    $region20: #{tpu_custom_call.1} parent=1 // pred_region
      _
    $region21: #{tpu_custom_call.1} parent=1 // pred_fallthru
      _
    %v24 = vld [vmem:[%s1] sm:$0xff]
    %v25 = vld [vmem:[%s1 + $0x8] sm:$0xff]
    %v26 = vpack.c.bf16 %v25, %v24
    %v27 = vld [vmem:[%s2] sm:$0xff]
    %v28 = vld [vmem:[%s2 + $0x8] sm:$0xff]
    %v29 = vld [vmem:[%s2 + $0x10] sm:$0xff]
    %v30 = vld [vmem:[%s2 + $0x18] sm:$0xff]
    %v31 = vld [vmem:[%s2 + $0x20] sm:$0xff]
    %v32 = vld [vmem:[%s2 + $0x28] sm:$0xff]
    %v33 = vld [vmem:[%s2 + $0x30] sm:$0xff]
    %v34 = vld [vmem:[%s2 + $0x38] sm:$0xff]
    %v35 = vld [vmem:[%s3] sm:$0x3]
    %v37 = vlaneseq
    %v38 = vshrl.u32 %v37, 7
    %v39 = vsub.s32 0, %v38
    %v40 = vrot.slane %v35, %v39
    %v41 = vlaneseq
    %v42 = vshrl.u32 %v41, 7
    %v43 = vsub.s32 1, %v42
    %v44 = vrot.slane %v35, %v43
    %v55 = vunpack.c.l.b16 %v27
    %v56 = vunpack.c.h.b16 %v27
    %v57 = vunpack.c.l.b16 %v28
    %v58 = vunpack.c.h.b16 %v28
    %v59 = vunpack.c.l.b16 %v29
    %v60 = vunpack.c.h.b16 %v29
    %v61 = vunpack.c.l.b16 %v30
    %v62 = vunpack.c.h.b16 %v30
    %v63 = vunpack.c.l.b16 %v31
    %v64 = vunpack.c.h.b16 %v31
    %v65 = vunpack.c.l.b16 %v32
    %v66 = vunpack.c.h.b16 %v32
    %v67 = vunpack.c.l.b16 %v33
    %v68 = vunpack.c.h.b16 %v33
    %v69 = vunpack.c.l.b16 %v34
    %v70 = vunpack.c.h.b16 %v34
    %v71 = vpack.c.b16 %v57, %v55
    %v72 = vpack.c.b16 %v58, %v56
    %v73 = vpack.c.b16 %v61, %v59
    %v74 = vpack.c.b16 %v62, %v60
    %v75 = vpack.c.b16 %v65, %v63
    %v76 = vpack.c.b16 %v66, %v64
    %v77 = vpack.c.b16 %v69, %v67
    %v78 = vpack.c.b16 %v70, %v68
    %vm87 = vcmask 523264
    %v89 = vsel %vm87, %v26, 0
    %91 = vmatprep.subr.bf16.mxu0 0
    %92 = vmatpush1.bf16.msra.mxu0 0
    %93 = vmatprep.subr.bf16.mxu0 0
    %94 = vmatpush1.bf16.msra.mxu0 0
    %95 = vmatprep.subr.bf16.mxu0 0
    %96 = vmatpush1.bf16.msra.mxu0 0
    %97 = vmatprep.subr.bf16.mxu0 0
    %98 = vmatpush1.bf16.msra.mxu0 0
    %99 = vmatprep.subr.bf16.mxu0 %v78
    %100 = vmatpush1.bf16.msra.mxu0 %v77
    %101 = vmatprep.subr.bf16.mxu0 %v76
    %102 = vmatpush1.bf16.msra.mxu0 %v75
    %103 = vmatprep.subr.bf16.mxu0 %v74
    %104 = vmatpush1.bf16.msra.mxu0 %v73
    %105 = vmatprep.subr.bf16.mxu0 %v72
    %106 = vmatpush1.bf16.msra.mxu0 %v71
    %107 = vmatprep.subr.bf16.mxu0 0
    %108 = vmatpush2.bf16.msra.mxu0 0
    %109 = vmatprep.subr.bf16.mxu0 0
    %110 = vmatpush2.bf16.msra.mxu0 0
    %111 = vmatprep.subr.bf16.mxu0 0
    %112 = vmatpush2.bf16.msra.mxu0 0
    %113 = vmatprep.subr.bf16.mxu0 0
    %114 = vmatpush2.bf16.msra.mxu0 0
    %115 = vmatprep.subr.bf16.mxu0 0
    %116 = vmatpush2.bf16.msra.mxu0 0
    %117 = vmatprep.subr.bf16.mxu0 0
    %118 = vmatpush2.bf16.msra.mxu0 0
    %119 = vmatprep.subr.bf16.mxu0 0
    %120 = vmatpush2.bf16.msra.mxu0 0
    %121 = vmatprep.subr.bf16.mxu0 0
    %122 = vmatpush2.bf16.msra.mxu0 0
    %123 = vmatprep.mubr.bf16.mxu0 0
    %124 = vmatmul.mubr.bf16.gmra.mxu0 %v89
    %v125 = vpop.f32.mrf.mxu0
    %v126 = vadd.f32 %v40, %v125
    %v127 = vpop.f32.mrf.mxu0
    %v128 = vadd.f32 %v44, %v127
    %v129 = vpop.f32.mrf.mxu0
    %v130 = vadd.f32 %v40, %v129
    %v131 = vpop.f32.mrf.mxu0
    %v132 = vadd.f32 %v44, %v131
    %133 = vdwg.mxu0
    %v134 = vmax.f32 %v126, 0.0
    %v135 = vmax.f32 %v128, 0.0
    %v136 = vmax.f32 %v130, 0.0
    %v137 = vmax.f32 %v132, 0.0
    %v138 = vpack.c.bf16 %v136, %v134
    %v139 = vpack.c.bf16 %v137, %v135
    %v140 = vld [vmem:[%s4] sm:$0xf]
    %v141 = vld [vmem:[%s4 + $0x4] sm:$0xf]
    %v142 = vld [vmem:[%s4 + $0x8] sm:$0xf]
    %v143 = vld [vmem:[%s4 + $0xc] sm:$0xf]
    %v144 = vld [vmem:[%s4 + $0x10] sm:$0xf]
    %v145 = vld [vmem:[%s4 + $0x14] sm:$0xf]
    %v146 = vld [vmem:[%s4 + $0x18] sm:$0xf]
    %v147 = vld [vmem:[%s4 + $0x1c] sm:$0xf]
    %v148 = vld [vmem:[%s4 + $0x20] sm:$0xf]
    %v149 = vld [vmem:[%s4 + $0x24] sm:$0xf]
    %v150 = vld [vmem:[%s4 + $0x28] sm:$0xf]
    %v151 = vld [vmem:[%s4 + $0x2c] sm:$0xf]
    %v152 = vld [vmem:[%s4 + $0x30] sm:$0xf]
    %v153 = vld [vmem:[%s4 + $0x34] sm:$0xf]
    %v154 = vld [vmem:[%s4 + $0x38] sm:$0xf]
    %v155 = vld [vmem:[%s4 + $0x3c] sm:$0xf]
    %v156 = vld [vmem:[%s4 + $0x40] sm:$0xf]
    %v157 = vld [vmem:[%s4 + $0x44] sm:$0xf]
    %v158 = vld [vmem:[%s4 + $0x48] sm:$0xf]
    %v159 = vld [vmem:[%s4 + $0x4c] sm:$0xf]
    %v160 = vld [vmem:[%s4 + $0x50] sm:$0xf]
    %v161 = vld [vmem:[%s4 + $0x54] sm:$0xf]
    %v162 = vld [vmem:[%s4 + $0x58] sm:$0xf]
    %v163 = vld [vmem:[%s4 + $0x5c] sm:$0xf]
    %v164 = vld [vmem:[%s4 + $0x60] sm:$0xf]
    %v165 = vld [vmem:[%s4 + $0x64] sm:$0xf]
    %v166 = vld [vmem:[%s4 + $0x68] sm:$0xf]
    %v167 = vld [vmem:[%s4 + $0x6c] sm:$0xf]
    %v168 = vld [vmem:[%s4 + $0x70] sm:$0xf]
    %v169 = vld [vmem:[%s4 + $0x74] sm:$0xf]
    %v170 = vld [vmem:[%s4 + $0x78] sm:$0xf]
    %v171 = vld [vmem:[%s4 + $0x7c] sm:$0xf]
    %v172 = vld [vmem:[%s5] sm:$0x1]
    %v174 = vlaneseq
    %v175 = vshrl.u32 %v174, 7
    %v176 = vsub.s32 0, %v175
    %v177 = vrot.slane %v172, %v176
    %v211 = vunpack.c.l.b16 %v140
    %v212 = vunpack.c.l.b16 %v141
    %v213 = vunpack.c.l.b16 %v142
    %v214 = vunpack.c.l.b16 %v143
    %v215 = vunpack.c.l.b16 %v144
    %v216 = vunpack.c.l.b16 %v145
    %v217 = vunpack.c.l.b16 %v146
    %v218 = vunpack.c.l.b16 %v147
    %v219 = vunpack.c.l.b16 %v148
    %v220 = vunpack.c.l.b16 %v149
    %v221 = vunpack.c.l.b16 %v150
    %v222 = vunpack.c.l.b16 %v151
    %v223 = vunpack.c.l.b16 %v152
    %v224 = vunpack.c.l.b16 %v153
    %v225 = vunpack.c.l.b16 %v154
    %v226 = vunpack.c.l.b16 %v155
    %v227 = vunpack.c.l.b16 %v156
    %v228 = vunpack.c.l.b16 %v157
    %v229 = vunpack.c.l.b16 %v158
    %v230 = vunpack.c.l.b16 %v159
    %v231 = vunpack.c.l.b16 %v160
    %v232 = vunpack.c.l.b16 %v161
    %v233 = vunpack.c.l.b16 %v162
    %v234 = vunpack.c.l.b16 %v163
    %v235 = vunpack.c.l.b16 %v164
    %v236 = vunpack.c.l.b16 %v165
    %v237 = vunpack.c.l.b16 %v166
    %v238 = vunpack.c.l.b16 %v167
    %v239 = vunpack.c.l.b16 %v168
    %v240 = vunpack.c.l.b16 %v169
    %v241 = vunpack.c.l.b16 %v170
    %v242 = vunpack.c.l.b16 %v171
    %v243 = vpack.c.b16 %v212, %v211
    %v244 = vpack.c.b16 %v214, %v213
    %v245 = vpack.c.b16 %v216, %v215
    %v246 = vpack.c.b16 %v218, %v217
    %v247 = vpack.c.b16 %v220, %v219
    %v248 = vpack.c.b16 %v222, %v221
    %v249 = vpack.c.b16 %v224, %v223
    %v250 = vpack.c.b16 %v226, %v225
    %v251 = vpack.c.b16 %v228, %v227
    %v252 = vpack.c.b16 %v230, %v229
    %v253 = vpack.c.b16 %v232, %v231
    %v254 = vpack.c.b16 %v234, %v233
    %v255 = vpack.c.b16 %v236, %v235
    %v256 = vpack.c.b16 %v238, %v237
    %v257 = vpack.c.b16 %v240, %v239
    %v258 = vpack.c.b16 %v242, %v241
    %275 = vmatprep.subr.bf16.mxu0 0
    %276 = vmatpush1.bf16.msra.mxu0 %v250
    %277 = vmatprep.subr.bf16.mxu0 0
    %278 = vmatpush1.bf16.msra.mxu0 %v249
    %279 = vmatprep.subr.bf16.mxu0 0
    %280 = vmatpush1.bf16.msra.mxu0 %v248
    %281 = vmatprep.subr.bf16.mxu0 0
    %282 = vmatpush1.bf16.msra.mxu0 %v247
    %283 = vmatprep.subr.bf16.mxu0 0
    %284 = vmatpush1.bf16.msra.mxu0 %v246
    %285 = vmatprep.subr.bf16.mxu0 0
    %286 = vmatpush1.bf16.msra.mxu0 %v245
    %287 = vmatprep.subr.bf16.mxu0 0
    %288 = vmatpush1.bf16.msra.mxu0 %v244
    %289 = vmatprep.subr.bf16.mxu0 0
    %290 = vmatpush1.bf16.msra.mxu0 %v243
    %291 = vmatprep.subr.bf16.mxu0 0
    %292 = vmatpush2.bf16.msra.mxu0 %v258
    %293 = vmatprep.subr.bf16.mxu0 0
    %294 = vmatpush2.bf16.msra.mxu0 %v257
    %295 = vmatprep.subr.bf16.mxu0 0
    %296 = vmatpush2.bf16.msra.mxu0 %v256
    %297 = vmatprep.subr.bf16.mxu0 0
    %298 = vmatpush2.bf16.msra.mxu0 %v255
    %299 = vmatprep.subr.bf16.mxu0 0
    %300 = vmatpush2.bf16.msra.mxu0 %v254
    %301 = vmatprep.subr.bf16.mxu0 0
    %302 = vmatpush2.bf16.msra.mxu0 %v253
    %303 = vmatprep.subr.bf16.mxu0 0
    %304 = vmatpush2.bf16.msra.mxu0 %v252
    %305 = vmatprep.subr.bf16.mxu0 0
    %306 = vmatpush2.bf16.msra.mxu0 %v251
    %307 = vmatprep.mubr.bf16.mxu0 %v139
    %308 = vmatmul.mubr.bf16.gmra.mxu0 %v138
    %v309 = vpop.f32.mrf.mxu0
    %v310 = vadd.f32 %v177, %v309
    %v311 = vpop.f32.mrf.mxu0
    %v312 = vpop.f32.mrf.mxu0
    %v313 = vadd.f32 %v177, %v312
    %v314 = vpop.f32.mrf.mxu0
    %315 = vdwg.mxu0
    %v316 = vlaneseq
    %v317 = vshrl.u32 %v316, 7
    %v318 = vadd.s32 %v317, 8
    %v319 = vlaneseq
    %v320 = vand.u32 %v319, 127
    %s321 = smul.u32 0, 16
    %v322 = vstv %s321
    %v323 = vadd.s32 %v317, %v322
    %v324 = vadd.s32 %v318, %v322
    %v325 = vmul.u32 %v323, 64
    %v326 = vmul.u32 %v324, 64
    %v327 = vadd.s32 %v325, %v320
    %v328 = vadd.s32 %v326, %v320
    %s329 = sld [smem:[#allocation3]]
    %s330 = smul.u32 %s329, 2654435769
    %v331 = vstv %s330
    %v332 = vadd.s32 %v327, %v331
    %v333 = vadd.s32 %v328, %v331
    %v334 = vshrl.u32 %v332, 16
    %v335 = vshrl.u32 %v333, 16
    %v336 = vxor.u32 %v332, %v334
    %v337 = vxor.u32 %v333, %v335
    %v338 = vmul.u32 %v336, 2246822507
    %v339 = vmul.u32 %v337, 2246822507
    %v340 = vshrl.u32 %v338, 13
    %v341 = vshrl.u32 %v339, 13
    %v342 = vxor.u32 %v338, %v340
    %v343 = vxor.u32 %v339, %v341
    %v344 = vmul.u32 %v342, 3266489909
    %v345 = vmul.u32 %v343, 3266489909
    %v346 = vshrl.u32 %v344, 16
    %v347 = vshrl.u32 %v345, 16
    %v348 = vxor.u32 %v344, %v346
    %v349 = vxor.u32 %v345, %v347
    %vm350 = vcmp.ge.u32.totalorder %v348, 858993459
    %vm351 = vcmp.ge.u32.totalorder %v349, 858993459
    %v352 = vmul.f32 %v310, 1.25
    %v353 = vmul.f32 %v313, 1.25
    %v354 = vsel %vm350, %v352, 0.0
    %v355 = vsel %vm351, %v353, 0.0
    %356 = vst.msk [vmem:[#allocation4] sm:$0xff] %vm87, %v354
    %357 = vst.msk [vmem:[#allocation4 + $0x8] sm:$0xff] %vm87, %v355
    // Predicated region
    $region22: #{tpu_custom_call.1} parent=1 // pred_check
      _
    $region23: #{tpu_custom_call.1} parent=1 // pred_check_branch
      %359 = sbr.rel (0) target = $region25
    $region24: #{tpu_custom_call.1} parent=1 // pred_region
      %s361 = ssub.s32 256, 256
      %362 = vsyncadd [#allocation5], %s361
      %s363 = sshll.u32 [#allocation4], 4
      %s364 = int_to_ptr.vmem [resolvable:$true] %s363
      %369 = dma.vmem_to_hbm [thread:$0]  %s364, 256, %s6, [#allocation5], 128, 128, 8
    $region25: #{tpu_custom_call.1} parent=1 // pred_fallthru
      _
    // Predicated region
    $region26: #{tpu_custom_call.1} parent=1 // pred_check
      _
    $region27: #{tpu_custom_call.1} parent=1 // pred_check_branch
      %371 = sbr.rel (0) target = $region29
    $region28: #{tpu_custom_call.1} parent=1 // pred_region
      %372 = dma.done [#allocation5], 256
    $region29: #{tpu_custom_call.1} parent=1 // pred_fallthru
      _
    %373 = vsyncpa [#allocation5], 1

</llo_original>
